<compile_context>
chip_gen: v6e
topology: v6e:2x2x1
jax: 0.10.0
libtpu: 0.0.40
codegen_flags: <defaults>
</compile_context>

<pallas_src>
import functools

import jax
import jax.numpy as jnp
from jax.experimental import pallas as pl
from jax.experimental.pallas import tpu as pltpu


def gcn_layer_kernel(x_ref, adj_ref, w_ref, b_ref, gamma_ref, beta_ref,
                     out_ref, *, f_out):
    Bt, N, F_in = x_ref.shape
    F_pad = out_ref.shape[-1]          # lane-dense (padded) feature width

    x = x_ref[...]                     # (Bt, N, F_in)
    adj = adj_ref[...]                 # (Bt, N, N)
    w = w_ref[...]                     # (F_in, 2*F_pad)   [wl_pad | wt_pad]
    b = b_ref[...]                     # (1, 2*F_pad)      [bl_pad | bt_pad]
    gamma = gamma_ref[...]             # (1, F_pad)
    beta = beta_ref[...]               # (1, F_pad)

    # --- one fused MXU matmul for both linears over the stacked rows -------
    x2 = x.reshape(Bt * N, F_in)
    h = jnp.dot(x2, w, preferred_element_type=jnp.float32) + b   # (Bt*N, 2*F_pad)
    h_lin = h[:, :F_pad].reshape(Bt, N, F_pad)     # neighbor path: linear(x)
    self_feat = h[:, F_pad:].reshape(Bt, N, F_pad)  # self_transform(x)

    # --- neighbor aggregation without materializing norm_adj ---------------
    # (adj / rowsum) @ h  ==  (adj @ h) * (1 / rowsum)   (row scaling commutes)
    inv_deg = 1.0 / (jnp.sum(adj, axis=-1, keepdims=True) + 1e-8)  # (Bt, N, 1)
    neighbor = jnp.einsum("bij,bjf->bif", adj, h_lin,
                          preferred_element_type=jnp.float32)
    out = self_feat + neighbor * inv_deg                            # (Bt, N, F_pad)

    # --- LayerNorm over the real f_out lanes (padded lanes of `out` are 0) --
    mean = jnp.sum(out, axis=-1, keepdims=True) * (1.0 / f_out)
    lane = jax.lax.broadcasted_iota(jnp.int32, out.shape, dimension=2)
    centered = jnp.where(lane < f_out, out - mean, 0.0)
    var = jnp.sum(centered * centered, axis=-1, keepdims=True) * (1.0 / f_out)
    inv_std = jax.lax.rsqrt(var + 1e-5)
    normed = centered * inv_std * gamma + beta   # padded gamma/beta are 0
    out_ref[...] = normed.astype(out_ref.dtype)


def _pick_block_batch(B, N, row_target=256, cap=32):
    """Smallest divisor of B whose Bt*N reaches row_target, else the largest <= cap."""
    divs = [d for d in range(1, min(B, cap) + 1) if B % d == 0]
    for d in divs:
        if d * N >= row_target:
            return d
    return divs[-1]


def gcn_layer(x, adj, wl, bl, wt, bt, gamma, beta, *, block_batch=None):
    B, N, F_in = x.shape
    F_out = wl.shape[1]
    F_pad = ((F_out + 127) // 128) * 128
    pad = F_pad - F_out

    # Fuse + lane-pad the two linears: W_cat = [wl | wt] zero-padded to F_pad each.
    wl_p = jnp.pad(wl, ((0, 0), (0, pad)))
    wt_p = jnp.pad(wt, ((0, 0), (0, pad)))
    w_cat = jnp.concatenate([wl_p, wt_p], axis=1)                  # (F_in, 2*F_pad)
    b_cat = jnp.concatenate(
        [jnp.pad(bl, (0, pad)), jnp.pad(bt, (0, pad))]).reshape(1, 2 * F_pad)
    gamma_p = jnp.pad(gamma, (0, pad)).reshape(1, F_pad)
    beta_p = jnp.pad(beta, (0, pad)).reshape(1, F_pad)

    Bt = block_batch or _pick_block_batch(B, N)
    assert B % Bt == 0, "block_batch must divide the batch size"
    grid = (B // Bt,)

    kernel = functools.partial(gcn_layer_kernel, f_out=F_out)

    out_padded = pl.pallas_call(
        kernel,
        out_shape=jax.ShapeDtypeStruct((B, N, F_pad), x.dtype),
        grid_spec=pltpu.PrefetchScalarGridSpec(
            num_scalar_prefetch=0,
            grid=grid,
            in_specs=[
                pl.BlockSpec((Bt, N, F_in), lambda b: (b, 0, 0)),       # x
                pl.BlockSpec((Bt, N, N), lambda b: (b, 0, 0)),          # adj
                pl.BlockSpec((F_in, 2 * F_pad), lambda b: (0, 0)),      # W_cat (resident)
                pl.BlockSpec((1, 2 * F_pad), lambda b: (0, 0)),         # b_cat
                pl.BlockSpec((1, F_pad), lambda b: (0, 0)),             # gamma
                pl.BlockSpec((1, F_pad), lambda b: (0, 0)),             # beta
            ],
            out_specs=pl.BlockSpec((Bt, N, F_pad), lambda b: (b, 0, 0)),
        ),
        compiler_params=pltpu.CompilerParams(
            dimension_semantics=("parallel",)),
    )(x, adj, w_cat, b_cat, gamma_p, beta_p)

    # Slice the lane padding back off.
    return out_padded[..., :F_out]


if __name__ == "__main__":
    # Small shapes consistent with the module's forward:
    #   x:   [batch, num_nodes, in_features]
    #   adj: [batch, num_nodes, num_nodes]
    B, N, F_in, F_out = 2, 16, 8, 32

    key = jax.random.PRNGKey(0)
    kx, kadj, kwl, kbl, kwt, kbt = jax.random.split(key, 6)

    x = jax.random.normal(kx, (B, N, F_in), dtype=jnp.float32)
    adj = jax.random.uniform(kadj, (B, N, N), dtype=jnp.float32)

    # Deterministic parameter init (nn.Linear-style uniform fan-in bound).
    bound = 1.0 / (F_in ** 0.5)
    wl = jax.random.uniform(kwl, (F_in, F_out), jnp.float32, -bound, bound)
    bl = jax.random.uniform(kbl, (F_out,), jnp.float32, -bound, bound)
    wt = jax.random.uniform(kwt, (F_in, F_out), jnp.float32, -bound, bound)
    bt = jax.random.uniform(kbt, (F_out,), jnp.float32, -bound, bound)
    gamma = jnp.ones((F_out,), jnp.float32)   # LayerNorm weight
    beta = jnp.zeros((F_out,), jnp.float32)   # LayerNorm bias

    out = gcn_layer(x, adj, wl, bl, wt, bt, gamma, beta)
    jax.block_until_ready(out)

    # Pure-JAX reference check (same math as the PyTorch module).
    adj_sum = jnp.sum(adj, axis=-1, keepdims=True) + 1e-8
    norm_adj = adj / adj_sum
    self_feat = x @ wt + bt
    neighbor = jnp.einsum("bij,bjf->bif", norm_adj, x @ wl + bl)
    o = self_feat + neighbor
    mu = o.mean(-1, keepdims=True)
    var = ((o - mu) ** 2).mean(-1, keepdims=True)
    ref = (o - mu) * jax.lax.rsqrt(var + 1e-5) * gamma + beta

    assert out.shape == (B, N, F_out)
    assert jnp.allclose(out, ref, atol=1e-4, rtol=1e-4)
    print("KERNEL_OK")
</pallas_src>

<mosaic_0001>
module attributes {stable_mosaic.version = 11 : i64} {
  func.func @gcn_layer_kernel(%arg0: i32, %arg1: memref<2x16x8xf32, #tpu.memory_space<vmem>>, %arg2: memref<2x16x16xf32, #tpu.memory_space<vmem>>, %arg3: memref<8x256xf32, #tpu.memory_space<vmem>>, %arg4: memref<1x256xf32, #tpu.memory_space<vmem>>, %arg5: memref<1x128xf32, #tpu.memory_space<vmem>>, %arg6: memref<1x128xf32, #tpu.memory_space<vmem>>, %arg7: memref<2x16x128xf32, #tpu.memory_space<vmem>>) attributes {dimension_semantics = [#tpu.dimension_semantics<parallel>], iteration_bounds = array<i64: 1>, scalar_prefetch = 0 : i64, scratch_operands = 0 : i64, tpu.core_type = #tpu.core_type<tc>, window_params = [{transform_indices = @transform_0, window_bounds = array<i64: 2, 16, 8>}, {transform_indices = @transform_1, window_bounds = array<i64: 2, 16, 16>}, {pipeline_mode = #tpu.pipeline_mode<synchronous>, transform_indices = @transform_2, window_bounds = array<i64: 8, 256>}, {pipeline_mode = #tpu.pipeline_mode<synchronous>, transform_indices = @transform_3, window_bounds = array<i64: 1, 256>}, {pipeline_mode = #tpu.pipeline_mode<synchronous>, transform_indices = @transform_4, window_bounds = array<i64: 1, 128>}, {pipeline_mode = #tpu.pipeline_mode<synchronous>, transform_indices = @transform_5, window_bounds = array<i64: 1, 128>}, {transform_indices = @transform_6, window_bounds = array<i64: 2, 16, 128>}]} {
    %c0 = arith.constant 0 : index
    %c0_0 = arith.constant 0 : index
    %c0_1 = arith.constant 0 : index
    %0 = vector.load %arg1[%c0, %c0_0, %c0_1] : memref<2x16x8xf32, #tpu.memory_space<vmem>>, vector<2x16x8xf32>
    %c0_2 = arith.constant 0 : index
    %c0_3 = arith.constant 0 : index
    %c0_4 = arith.constant 0 : index
    %1 = vector.load %arg2[%c0_2, %c0_3, %c0_4] : memref<2x16x16xf32, #tpu.memory_space<vmem>>, vector<2x16x16xf32>
    %c0_5 = arith.constant 0 : index
    %c0_6 = arith.constant 0 : index
    %2 = vector.load %arg3[%c0_5, %c0_6] : memref<8x256xf32, #tpu.memory_space<vmem>>, vector<8x256xf32>
    %c0_7 = arith.constant 0 : index
    %c0_8 = arith.constant 0 : index
    %3 = vector.load %arg4[%c0_7, %c0_8] : memref<1x256xf32, #tpu.memory_space<vmem>>, vector<1x256xf32>
    %c0_9 = arith.constant 0 : index
    %c0_10 = arith.constant 0 : index
    %4 = vector.load %arg5[%c0_9, %c0_10] : memref<1x128xf32, #tpu.memory_space<vmem>>, vector<1x128xf32>
    %c0_11 = arith.constant 0 : index
    %c0_12 = arith.constant 0 : index
    %5 = vector.load %arg6[%c0_11, %c0_12] : memref<1x128xf32, #tpu.memory_space<vmem>>, vector<1x128xf32>
    %6 = vector.shape_cast %0 : vector<2x16x8xf32> to vector<32x8xf32>
    %cst = arith.constant dense<0.000000e+00> : vector<32x256xf32>
    %7 = tpu.matmul %6, %2, %cst {dimension_numbers = #tpu.dot_dimension_numbers<[1], [0], [0], [1], [0, 0, 1, 1], [], []>} : vector<32x8xf32>, vector<8x256xf32>, vector<32x256xf32> -> vector<32x256xf32>
    %8 = vector.broadcast %3 : vector<1x256xf32> to vector<32x256xf32>
    %9 = arith.addf %7, %8 : vector<32x256xf32>
    %10 = vector.extract_strided_slice %9 {offsets = [0, 0], sizes = [32, 128], strides = [1, 1]} : vector<32x256xf32> to vector<32x128xf32>
    %11 = vector.shape_cast %10 : vector<32x128xf32> to vector<2x16x128xf32>
    %12 = vector.extract_strided_slice %9 {offsets = [0, 128], sizes = [32, 128], strides = [1, 1]} : vector<32x256xf32> to vector<32x128xf32>
    %13 = vector.shape_cast %12 : vector<32x128xf32> to vector<2x16x128xf32>
    %cst_13 = arith.constant dense<0.000000e+00> : vector<2x16xf32>
    %14 = vector.multi_reduction <add>, %1, %cst_13 [2] : vector<2x16x16xf32> to vector<2x16xf32>
    %15 = vector.shape_cast %14 : vector<2x16xf32> to vector<2x16x1xf32>
    %cst_14 = arith.constant 9.99999993E-9 : f32
    %16 = vector.broadcast %cst_14 : f32 to vector<2x16x1xf32>
    %17 = arith.addf %15, %16 : vector<2x16x1xf32>
    %cst_15 = arith.constant 1.000000e+00 : f32
    %18 = vector.broadcast %cst_15 : f32 to vector<2x16x1xf32>
    %19 = arith.divf %18, %17 : vector<2x16x1xf32>
    "tpu.trace_start"() <{level = 10 : i32, message = "bij,bjf->bif"}> : () -> ()
    %cst_16 = arith.constant dense<0.000000e+00> : vector<2x16x128xf32>
    %20 = tpu.matmul %1, %11, %cst_16 {dimension_numbers = #tpu.dot_dimension_numbers<[2], [1], [1], [2], [0, 0, 0, 1, 1, 2], [0], [0]>} : vector<2x16x16xf32>, vector<2x16x128xf32>, vector<2x16x128xf32> -> vector<2x16x128xf32>
    "tpu.trace_stop"() : () -> ()
    %21 = vector.broadcast %19 : vector<2x16x1xf32> to vector<2x16x128xf32>
    %22 = arith.mulf %20, %21 : vector<2x16x128xf32>
    %23 = arith.addf %13, %22 : vector<2x16x128xf32>
    %cst_17 = arith.constant dense<0.000000e+00> : vector<2x16xf32>
    %24 = vector.multi_reduction <add>, %23, %cst_17 [2] : vector<2x16x128xf32> to vector<2x16xf32>
    %25 = vector.shape_cast %24 : vector<2x16xf32> to vector<2x16x1xf32>
    %cst_18 = arith.constant 3.125000e-02 : f32
    %26 = vector.broadcast %cst_18 : f32 to vector<2x16x1xf32>
    %27 = arith.mulf %25, %26 : vector<2x16x1xf32>
    %28 = tpu.iota {dimensions = array<i32: 2>} : vector<2x16x128xi32>
    %c32_i32 = arith.constant 32 : i32
    %29 = vector.broadcast %c32_i32 : i32 to vector<2x16x128xi32>
    %30 = arith.cmpi slt, %28, %29 : vector<2x16x128xi32>
    %31 = vector.broadcast %27 : vector<2x16x1xf32> to vector<2x16x128xf32>
    %32 = arith.subf %23, %31 : vector<2x16x128xf32>
    %cst_19 = arith.constant 0.000000e+00 : f32
    %33 = vector.broadcast %cst_19 : f32 to vector<2x16x128xf32>
    %34 = arith.select %30, %32, %33 : vector<2x16x128xi1>, vector<2x16x128xf32>
    %35 = arith.mulf %34, %34 : vector<2x16x128xf32>
    %cst_20 = arith.constant dense<0.000000e+00> : vector<2x16xf32>
    %36 = vector.multi_reduction <add>, %35, %cst_20 [2] : vector<2x16x128xf32> to vector<2x16xf32>
    %37 = vector.shape_cast %36 : vector<2x16xf32> to vector<2x16x1xf32>
    %cst_21 = arith.constant 3.125000e-02 : f32
    %38 = vector.broadcast %cst_21 : f32 to vector<2x16x1xf32>
    %39 = arith.mulf %37, %38 : vector<2x16x1xf32>
    %cst_22 = arith.constant 9.99999974E-6 : f32
    %40 = vector.broadcast %cst_22 : f32 to vector<2x16x1xf32>
    %41 = arith.addf %39, %40 : vector<2x16x1xf32>
    %42 = math.rsqrt %41 : vector<2x16x1xf32>
    %43 = vector.broadcast %42 : vector<2x16x1xf32> to vector<2x16x128xf32>
    %44 = arith.mulf %34, %43 : vector<2x16x128xf32>
    %45 = vector.shape_cast %4 : vector<1x128xf32> to vector<1x1x128xf32>
    %46 = vector.broadcast %45 : vector<1x1x128xf32> to vector<2x16x128xf32>
    %47 = arith.mulf %44, %46 : vector<2x16x128xf32>
    %48 = vector.shape_cast %5 : vector<1x128xf32> to vector<1x1x128xf32>
    %49 = vector.broadcast %48 : vector<1x1x128xf32> to vector<2x16x128xf32>
    %50 = arith.addf %47, %49 : vector<2x16x128xf32>
    %c0_23 = arith.constant 0 : index
    %c0_24 = arith.constant 0 : index
    %c0_25 = arith.constant 0 : index
    %51 = vector.load %arg7[%c0_23, %c0_24, %c0_25] : memref<2x16x128xf32, #tpu.memory_space<vmem>>, vector<2x16x128xf32>
    tpu.vector_store %arg7[%c0_23, %c0_24, %c0_25], %50 {strides = array<i32>} : memref<2x16x128xf32, #tpu.memory_space<vmem>>, vector<2x16x128xf32>,
    return
  }
  func.func @transform_0(%arg0: i32) -> (i32, i32, i32) {
    %c0_i32 = arith.constant 0 : i32
    %c0_i32_0 = arith.constant 0 : i32
    %c0_i32_1 = arith.constant 0 : i32
    return %arg0, %c0_i32, %c0_i32_0 : i32, i32, i32
  }
  func.func @transform_1(%arg0: i32) -> (i32, i32, i32) {
    %c0_i32 = arith.constant 0 : i32
    %c0_i32_0 = arith.constant 0 : i32
    %c0_i32_1 = arith.constant 0 : i32
    return %arg0, %c0_i32, %c0_i32_0 : i32, i32, i32
  }
  func.func @transform_2(%arg0: i32) -> (i32, i32) {
    %c0_i32 = arith.constant 0 : i32
    %c0_i32_0 = arith.constant 0 : i32
    %c0_i32_1 = arith.constant 0 : i32
    return %c0_i32, %c0_i32_0 : i32, i32
  }
  func.func @transform_3(%arg0: i32) -> (i32, i32) {
    %c0_i32 = arith.constant 0 : i32
    %c0_i32_0 = arith.constant 0 : i32
    %c0_i32_1 = arith.constant 0 : i32
    return %c0_i32, %c0_i32_0 : i32, i32
  }
  func.func @transform_4(%arg0: i32) -> (i32, i32) {
    %c0_i32 = arith.constant 0 : i32
    %c0_i32_0 = arith.constant 0 : i32
    %c0_i32_1 = arith.constant 0 : i32
    return %c0_i32, %c0_i32_0 : i32, i32
  }
  func.func @transform_5(%arg0: i32) -> (i32, i32) {
    %c0_i32 = arith.constant 0 : i32
    %c0_i32_0 = arith.constant 0 : i32
    %c0_i32_1 = arith.constant 0 : i32
    return %c0_i32, %c0_i32_0 : i32, i32
  }
  func.func @transform_6(%arg0: i32) -> (i32, i32, i32) {
    %c0_i32 = arith.constant 0 : i32
    %c0_i32_0 = arith.constant 0 : i32
    %c0_i32_1 = arith.constant 0 : i32
    return %arg0, %c0_i32, %c0_i32_0 : i32, i32, i32
  }
}

</mosaic_0001>

<llo_original>
// kernel: tpu_custom_call.1
$region0: #{tpu_custom_call.1}
  #allocation0 [shape = 'u32[]', space=smem, size = 0x4, offset = 0x4, fixed_abs, tag = 'smem constant byte address 0x4 - core index']
  #allocation1 [shape = 'u32[144,128]{1,0:T(1,128)}', space=vmem, size = 0x12000, scoped, tag = 'internal scratch']
  %s0 = inlined_call_operand.vmem [shape: f32[2,16,8], index: 0, kind: input, shape index: {}]
  %s1 = inlined_call_operand.vmem [shape: f32[2,16,16], index: 1, kind: input, shape index: {}]
  %s2 = inlined_call_operand.vmem [shape: f32[8,256], index: 2, kind: input, shape index: {}]
  %s3 = inlined_call_operand.vmem [shape: f32[1,256], index: 3, kind: input, shape index: {}]
  %s4 = inlined_call_operand.vmem [shape: f32[1,128], index: 4, kind: input, shape index: {}]
  %s5 = inlined_call_operand.vmem [shape: f32[1,128], index: 5, kind: input, shape index: {}]
  %s6 = inlined_call_operand.hbm [shape: f32[2,16,128], index: 6, kind: output, shape index: {}]
  %s7 = sld [smem:[#allocation0]]
  $region34: #{tpu_custom_call.1} parent=0
    _
  %s9 = ssub.s32 1, %s7
  %s10 = scalar_select 0, %s9, %s7
  $region1: #{tpu_custom_call.1} parent=0
    #allocation2 [shape = 'u8[16384]{0}', space=vmem, size = 0x4000, scoped, tag = 'output window, operand 0, single buffered']
    #allocation3 [shape = 's32[1]{0}', space=sflag, size = 0x4, scoped, tag = 'scoped memory for tpu_custom_call.1']
    %11 = vsyncpa [#allocation3], 0
    // Predicated region
    $region2: #{tpu_custom_call.1} parent=1 // pred_check
      _
    $region3: #{tpu_custom_call.1} parent=1 // pred_check_branch
      %13 = sbr.rel (0) target = $region5
    $region4: #{tpu_custom_call.1} parent=1 // pred_region
      _
    $region5: #{tpu_custom_call.1} parent=1 // pred_fallthru
      _
    // Predicated region
    $region6: #{tpu_custom_call.1} parent=1 // pred_check
      _
    $region7: #{tpu_custom_call.1} parent=1 // pred_check_branch
      %15 = sbr.rel (0) target = $region9
    $region8: #{tpu_custom_call.1} parent=1 // pred_region
      _
    $region9: #{tpu_custom_call.1} parent=1 // pred_fallthru
      _
    // Predicated region
    $region10: #{tpu_custom_call.1} parent=1 // pred_check
      _
    $region11: #{tpu_custom_call.1} parent=1 // pred_check_branch
      %17 = sbr.rel (0) target = $region13
    $region12: #{tpu_custom_call.1} parent=1 // pred_region
      _
    $region13: #{tpu_custom_call.1} parent=1 // pred_fallthru
      _
    // Predicated region
    $region14: #{tpu_custom_call.1} parent=1 // pred_check
      _
    $region15: #{tpu_custom_call.1} parent=1 // pred_check_branch
      %19 = sbr.rel (0) target = $region17
    $region16: #{tpu_custom_call.1} parent=1 // pred_region
      _
    $region17: #{tpu_custom_call.1} parent=1 // pred_fallthru
      _
    // Predicated region
    $region18: #{tpu_custom_call.1} parent=1 // pred_check
      _
    $region19: #{tpu_custom_call.1} parent=1 // pred_check_branch
      %21 = sbr.rel (0) target = $region21
    $region20: #{tpu_custom_call.1} parent=1 // pred_region
      _
    $region21: #{tpu_custom_call.1} parent=1 // pred_fallthru
      _
    // Predicated region
    $region22: #{tpu_custom_call.1} parent=1 // pred_check
      _
    $region23: #{tpu_custom_call.1} parent=1 // pred_check_branch
      %23 = sbr.rel (0) target = $region25
    $region24: #{tpu_custom_call.1} parent=1 // pred_region
      _
    $region25: #{tpu_custom_call.1} parent=1 // pred_fallthru
      _
    %v24 = vld [vmem:[%s0] sm:$0xff]
    %v25 = vld [vmem:[%s0 + $0x8] sm:$0xff]
    %v26 = vld [vmem:[%s0 + $0x10] sm:$0xff]
    %v27 = vld [vmem:[%s0 + $0x18] sm:$0xff]
    %v28 = vld [vmem:[%s1] sm:$0xff]
    %v29 = vld [vmem:[%s1 + $0x8] sm:$0xff]
    %v30 = vld [vmem:[%s1 + $0x10] sm:$0xff]
    %v31 = vld [vmem:[%s1 + $0x18] sm:$0xff]
    %v32 = vld [vmem:[%s2] sm:$0xff]
    %v33 = vld [vmem:[%s2 + $0x8] sm:$0xff]
    %v34 = vld [vmem:[%s3] sm:$0x3]
    %v35 = vld [vmem:[%s4] sm:$0x1]
    %v36 = vld [vmem:[%s5] sm:$0x1]
    %v38 = vlaneseq
    %v39 = vshrl.u32 %v38, 7
    %v40 = vsub.s32 0, %v39
    %v41 = vrot.slane %v34, %v40
    %v42 = vlaneseq
    %v43 = vshrl.u32 %v42, 7
    %v44 = vsub.s32 1, %v43
    %v45 = vrot.slane %v34, %v44
    %vm48 = vcmask 64512
    %v50 = vsel %vm48, %v24, 0
    %v53 = vsel %vm48, %v25, 0
    %v56 = vsel %vm48, %v26, 0
    %v59 = vsel %vm48, %v27, 0
    %61 = vmatprep.subr.mxu0 0.0
    %62 = vmatpush1.msra.mxu0 0.0
    %63 = vmatprep.subr.mxu0 0.0
    %64 = vmatpush1.msra.mxu0 0.0
    %65 = vmatprep.subr.mxu0 0.0
    %66 = vmatpush1.msra.mxu0 0.0
    %67 = vmatprep.subr.mxu0 0.0
    %68 = vmatpush1.msra.mxu0 0.0
    %69 = vmatprep.subr.mxu0 0.0
    %70 = vmatpush1.msra.mxu0 0.0
    %71 = vmatprep.subr.mxu0 0.0
    %72 = vmatpush1.msra.mxu0 0.0
    %73 = vmatprep.subr.mxu0 0.0
    %74 = vmatpush1.msra.mxu0 0.0
    %75 = vmatprep.subr.mxu0 0.0
    %76 = vmatpush1.msra.mxu0 0.0
    %77 = vmatprep.subr.mxu0 0.0
    %78 = vmatpush1.msra.mxu0 0.0
    %79 = vmatprep.subr.mxu0 0.0
    %80 = vmatpush1.msra.mxu0 0.0
    %81 = vmatprep.subr.mxu0 0.0
    %82 = vmatpush1.msra.mxu0 0.0
    %83 = vmatprep.subr.mxu0 0.0
    %84 = vmatpush1.msra.mxu0 0.0
    %85 = vmatprep.subr.mxu0 0.0
    %86 = vmatpush1.msra.mxu0 0.0
    %87 = vmatprep.subr.mxu0 0.0
    %88 = vmatpush1.msra.mxu0 0.0
    %89 = vmatprep.subr.mxu0 0.0
    %90 = vmatpush1.msra.mxu0 0.0
    %91 = vmatprep.subr.mxu0 %v33
    %92 = vmatpush1.msra.mxu0 %v32
    %93 = vmatprep.subr.mxu0 0.0
    %94 = vmatpush2.msra.mxu0 0.0
    %95 = vmatprep.subr.mxu0 0.0
    %96 = vmatpush2.msra.mxu0 0.0
    %97 = vmatprep.subr.mxu0 0.0
    %98 = vmatpush2.msra.mxu0 0.0
    %99 = vmatprep.subr.mxu0 0.0
    %100 = vmatpush2.msra.mxu0 0.0
    %101 = vmatprep.subr.mxu0 0.0
    %102 = vmatpush2.msra.mxu0 0.0
    %103 = vmatprep.subr.mxu0 0.0
    %104 = vmatpush2.msra.mxu0 0.0
    %105 = vmatprep.subr.mxu0 0.0
    %106 = vmatpush2.msra.mxu0 0.0
    %107 = vmatprep.subr.mxu0 0.0
    %108 = vmatpush2.msra.mxu0 0.0
    %109 = vmatprep.subr.mxu0 0.0
    %110 = vmatpush2.msra.mxu0 0.0
    %111 = vmatprep.subr.mxu0 0.0
    %112 = vmatpush2.msra.mxu0 0.0
    %113 = vmatprep.subr.mxu0 0.0
    %114 = vmatpush2.msra.mxu0 0.0
    %115 = vmatprep.subr.mxu0 0.0
    %116 = vmatpush2.msra.mxu0 0.0
    %117 = vmatprep.subr.mxu0 0.0
    %118 = vmatpush2.msra.mxu0 0.0
    %119 = vmatprep.subr.mxu0 0.0
    %120 = vmatpush2.msra.mxu0 0.0
    %121 = vmatprep.subr.mxu0 0.0
    %122 = vmatpush2.msra.mxu0 0.0
    %123 = vmatprep.subr.mxu0 0.0
    %124 = vmatpush2.msra.mxu0 0.0
    %125 = vmatprep.mubr.f32.mxu0 0.0
    %126 = vmatmul.mubr.f32.gmra.mxu0 %v50
    %v127 = vpop.f32.mrf.mxu0
    %v128 = vadd.f32 %v41, %v127
    %v129 = vpop.f32.mrf.mxu0
    %v130 = vadd.f32 %v45, %v129
    %131 = vmatprep.mubr.f32.mxu0 0.0
    %132 = vmatmul.mubr.f32.gmra.mxu0 %v53
    %v133 = vpop.f32.mrf.mxu0
    %v134 = vadd.f32 %v41, %v133
    %v135 = vpop.f32.mrf.mxu0
    %v136 = vadd.f32 %v45, %v135
    %137 = vmatprep.mubr.f32.mxu0 0.0
    %138 = vmatmul.mubr.f32.gmra.mxu0 %v56
    %v139 = vpop.f32.mrf.mxu0
    %v140 = vadd.f32 %v41, %v139
    %v141 = vpop.f32.mrf.mxu0
    %v142 = vadd.f32 %v45, %v141
    %143 = vmatprep.mubr.f32.mxu0 0.0
    %144 = vmatmul.mubr.f32.gmra.mxu0 %v59
    %v145 = vpop.f32.mrf.mxu0
    %v146 = vadd.f32 %v41, %v145
    %v147 = vpop.f32.mrf.mxu0
    %v148 = vadd.f32 %v45, %v147
    %149 = vdwg.mxu0
    %vm150 = vcmask 130048
    %v151 = vsel %vm150, %v28, 0.0
    %152 = vadd.xlane.f32.xlu0 %v151
    %v153 = vpop.xlane.xlu0 %152
    %v154 = vsel %vm150, %v29, 0.0
    %155 = vadd.xlane.f32.xlu0 %v154
    %v156 = vpop.xlane.xlu0 %155
    %v157 = vsel %vm150, %v30, 0.0
    %158 = vadd.xlane.f32.xlu0 %v157
    %v159 = vpop.xlane.xlu0 %158
    %v160 = vsel %vm150, %v31, 0.0
    %161 = vadd.xlane.f32.xlu0 %v160
    %v162 = vpop.xlane.xlu0 %161
    %v163 = vadd.f32 %v153, 1e-08
    %v164 = vadd.f32 %v156, 1e-08
    %v165 = vadd.f32 %v159, 1e-08
    %v166 = vadd.f32 %v162, 1e-08
    %v167 = vrcp.pop %v163
    %v168 = vmul.f32 1.0, %v167
    %v169 = vrcp.pop %v164
    %v170 = vmul.f32 1.0, %v169
    %v171 = vrcp.pop %v165
    %v172 = vmul.f32 1.0, %v171
    %v173 = vrcp.pop %v166
    %v174 = vmul.f32 1.0, %v173
    %v176 = vsel %vm150, %v28, 0
    %v179 = vsel %vm150, %v29, 0
    %181 = vmatprep.subr.mxu0 0.0
    %182 = vmatpush1.msra.mxu0 0.0
    %183 = vmatprep.subr.mxu0 0.0
    %184 = vmatpush1.msra.mxu0 0.0
    %185 = vmatprep.subr.mxu0 0.0
    %186 = vmatpush1.msra.mxu0 0.0
    %187 = vmatprep.subr.mxu0 0.0
    %188 = vmatpush1.msra.mxu0 0.0
    %189 = vmatprep.subr.mxu0 0.0
    %190 = vmatpush1.msra.mxu0 0.0
    %191 = vmatprep.subr.mxu0 0.0
    %192 = vmatpush1.msra.mxu0 0.0
    %193 = vmatprep.subr.mxu0 0.0
    %194 = vmatpush1.msra.mxu0 0.0
    %195 = vmatprep.subr.mxu0 0.0
    %196 = vmatpush1.msra.mxu0 0.0
    %197 = vmatprep.subr.mxu0 0.0
    %198 = vmatpush1.msra.mxu0 0.0
    %199 = vmatprep.subr.mxu0 0.0
    %200 = vmatpush1.msra.mxu0 0.0
    %201 = vmatprep.subr.mxu0 0.0
    %202 = vmatpush1.msra.mxu0 0.0
    %203 = vmatprep.subr.mxu0 0.0
    %204 = vmatpush1.msra.mxu0 0.0
    %205 = vmatprep.subr.mxu0 0.0
    %206 = vmatpush1.msra.mxu0 0.0
    %207 = vmatprep.subr.mxu0 0.0
    %208 = vmatpush1.msra.mxu0 0.0
    %209 = vmatprep.subr.mxu0 0.0
    %210 = vmatpush1.msra.mxu0 %v134
    %211 = vmatprep.subr.mxu0 0.0
    %212 = vmatpush1.msra.mxu0 %v128
    %213 = vmatprep.subr.mxu0 0.0
    %214 = vmatpush2.msra.mxu0 0.0
    %215 = vmatprep.subr.mxu0 0.0
    %216 = vmatpush2.msra.mxu0 0.0
    %217 = vmatprep.subr.mxu0 0.0
    %218 = vmatpush2.msra.mxu0 0.0
    %219 = vmatprep.subr.mxu0 0.0
    %220 = vmatpush2.msra.mxu0 0.0
    %221 = vmatprep.subr.mxu0 0.0
    %222 = vmatpush2.msra.mxu0 0.0
    %223 = vmatprep.subr.mxu0 0.0
    %224 = vmatpush2.msra.mxu0 0.0
    %225 = vmatprep.subr.mxu0 0.0
    %226 = vmatpush2.msra.mxu0 0.0
    %227 = vmatprep.subr.mxu0 0.0
    %228 = vmatpush2.msra.mxu0 0.0
    %229 = vmatprep.subr.mxu0 0.0
    %230 = vmatpush2.msra.mxu0 0.0
    %231 = vmatprep.subr.mxu0 0.0
    %232 = vmatpush2.msra.mxu0 0.0
    %233 = vmatprep.subr.mxu0 0.0
    %234 = vmatpush2.msra.mxu0 0.0
    %235 = vmatprep.subr.mxu0 0.0
    %236 = vmatpush2.msra.mxu0 0.0
    %237 = vmatprep.subr.mxu0 0.0
    %238 = vmatpush2.msra.mxu0 0.0
    %239 = vmatprep.subr.mxu0 0.0
    %240 = vmatpush2.msra.mxu0 0.0
    %241 = vmatprep.subr.mxu0 0.0
    %242 = vmatpush2.msra.mxu0 0.0
    %243 = vmatprep.subr.mxu0 0.0
    %244 = vmatpush2.msra.mxu0 0.0
    %245 = vmatprep.mubr.f32.mxu0 0.0
    %246 = vmatmul.mubr.f32.gmra.mxu0 %v176
    %v247 = vpop.f32.mrf.mxu0
    %v248 = vadd.f32 0.0, %v247
    %v249 = vpop.f32.mrf.mxu0
    %250 = vmatprep.mubr.f32.mxu0 0.0
    %251 = vmatmul.mubr.f32.gmra.mxu0 %v179
    %v252 = vpop.f32.mrf.mxu0
    %v253 = vadd.f32 0.0, %v252
    %v254 = vpop.f32.mrf.mxu0
    %255 = vdwg.mxu0
    %v257 = vsel %vm150, %v30, 0
    %v260 = vsel %vm150, %v31, 0
    %262 = vmatprep.subr.mxu0 0.0
    %263 = vmatpush1.msra.mxu0 0.0
    %264 = vmatprep.subr.mxu0 0.0
    %265 = vmatpush1.msra.mxu0 0.0
    %266 = vmatprep.subr.mxu0 0.0
    %267 = vmatpush1.msra.mxu0 0.0
    %268 = vmatprep.subr.mxu0 0.0
    %269 = vmatpush1.msra.mxu0 0.0
    %270 = vmatprep.subr.mxu0 0.0
    %271 = vmatpush1.msra.mxu0 0.0
    %272 = vmatprep.subr.mxu0 0.0
    %273 = vmatpush1.msra.mxu0 0.0
    %274 = vmatprep.subr.mxu0 0.0
    %275 = vmatpush1.msra.mxu0 0.0
    %276 = vmatprep.subr.mxu0 0.0
    %277 = vmatpush1.msra.mxu0 0.0
    %278 = vmatprep.subr.mxu0 0.0
    %279 = vmatpush1.msra.mxu0 0.0
    %280 = vmatprep.subr.mxu0 0.0
    %281 = vmatpush1.msra.mxu0 0.0
    %282 = vmatprep.subr.mxu0 0.0
    %283 = vmatpush1.msra.mxu0 0.0
    %284 = vmatprep.subr.mxu0 0.0
    %285 = vmatpush1.msra.mxu0 0.0
    %286 = vmatprep.subr.mxu0 0.0
    %287 = vmatpush1.msra.mxu0 0.0
    %288 = vmatprep.subr.mxu0 0.0
    %289 = vmatpush1.msra.mxu0 0.0
    %290 = vmatprep.subr.mxu0 0.0
    %291 = vmatpush1.msra.mxu0 %v146
    %292 = vmatprep.subr.mxu0 0.0
    %293 = vmatpush1.msra.mxu0 %v140
    %294 = vmatprep.subr.mxu0 0.0
    %295 = vmatpush2.msra.mxu0 0.0
    %296 = vmatprep.subr.mxu0 0.0
    %297 = vmatpush2.msra.mxu0 0.0
    %298 = vmatprep.subr.mxu0 0.0
    %299 = vmatpush2.msra.mxu0 0.0
    %300 = vmatprep.subr.mxu0 0.0
    %301 = vmatpush2.msra.mxu0 0.0
    %302 = vmatprep.subr.mxu0 0.0
    %303 = vmatpush2.msra.mxu0 0.0
    %304 = vmatprep.subr.mxu0 0.0
    %305 = vmatpush2.msra.mxu0 0.0
    %306 = vmatprep.subr.mxu0 0.0
    %307 = vmatpush2.msra.mxu0 0.0
    %308 = vmatprep.subr.mxu0 0.0
    %309 = vmatpush2.msra.mxu0 0.0
    %310 = vmatprep.subr.mxu0 0.0
    %311 = vmatpush2.msra.mxu0 0.0
    %312 = vmatprep.subr.mxu0 0.0
    %313 = vmatpush2.msra.mxu0 0.0
    %314 = vmatprep.subr.mxu0 0.0
    %315 = vmatpush2.msra.mxu0 0.0
    %316 = vmatprep.subr.mxu0 0.0
    %317 = vmatpush2.msra.mxu0 0.0
    %318 = vmatprep.subr.mxu0 0.0
    %319 = vmatpush2.msra.mxu0 0.0
    %320 = vmatprep.subr.mxu0 0.0
    %321 = vmatpush2.msra.mxu0 0.0
    %322 = vmatprep.subr.mxu0 0.0
    %323 = vmatpush2.msra.mxu0 0.0
    %324 = vmatprep.subr.mxu0 0.0
    %325 = vmatpush2.msra.mxu0 0.0
    %326 = vmatprep.mubr.f32.mxu0 0.0
    %327 = vmatmul.mubr.f32.gmra.mxu0 %v257
    %v328 = vpop.f32.mrf.mxu0
    %v329 = vadd.f32 0.0, %v328
    %v330 = vpop.f32.mrf.mxu0
    %331 = vmatprep.mubr.f32.mxu0 0.0
    %332 = vmatmul.mubr.f32.gmra.mxu0 %v260
    %v333 = vpop.f32.mrf.mxu0
    %v334 = vadd.f32 0.0, %v333
    %v335 = vpop.f32.mrf.mxu0
    %336 = vdwg.mxu0
    %v337 = vmul.f32 %v248, %v168
    %v338 = vmul.f32 %v253, %v170
    %v339 = vmul.f32 %v329, %v172
    %v340 = vmul.f32 %v334, %v174
    %v341 = vadd.f32 %v130, %v337
    %v342 = vadd.f32 %v136, %v338
    %v343 = vadd.f32 %v142, %v339
    %v344 = vadd.f32 %v148, %v340
    %345 = vadd.xlane.f32.xlu0 %v341
    %v346 = vpop.xlane.xlu0 %345
    %347 = vadd.xlane.f32.xlu0 %v342
    %v348 = vpop.xlane.xlu0 %347
    %349 = vadd.xlane.f32.xlu0 %v343
    %v350 = vpop.xlane.xlu0 %349
    %351 = vadd.xlane.f32.xlu0 %v344
    %v352 = vpop.xlane.xlu0 %351
    %v353 = vmul.f32 %v346, 0.03125
    %v354 = vmul.f32 %v348, 0.03125
    %v355 = vmul.f32 %v350, 0.03125
    %v356 = vmul.f32 %v352, 0.03125
    %v357 = vlaneseq
    %v358 = vand.u32 %v357, 127
    %vm359 = vcmp.lt.s32.totalorder %v358, 32
    %v360 = vsub.f32 %v341, %v353
    %v361 = vsub.f32 %v342, %v354
    %v362 = vsub.f32 %v343, %v355
    %v363 = vsub.f32 %v344, %v356
    %v364 = vsel %vm359, %v360, 0.0
    %v365 = vsel %vm359, %v361, 0.0
    %v366 = vsel %vm359, %v362, 0.0
    %v367 = vsel %vm359, %v363, 0.0
    %v368 = vmul.f32 %v364, %v364
    %v369 = vmul.f32 %v365, %v365
    %v370 = vmul.f32 %v366, %v366
    %v371 = vmul.f32 %v367, %v367
    %372 = vadd.xlane.f32.xlu0 %v368
    %v373 = vpop.xlane.xlu0 %372
    %374 = vadd.xlane.f32.xlu0 %v369
    %v375 = vpop.xlane.xlu0 %374
    %376 = vadd.xlane.f32.xlu0 %v370
    %v377 = vpop.xlane.xlu0 %376
    %378 = vadd.xlane.f32.xlu0 %v371
    %v379 = vpop.xlane.xlu0 %378
    %v380 = vmul.f32 %v373, 0.03125
    %v381 = vmul.f32 %v375, 0.03125
    %v382 = vmul.f32 %v377, 0.03125
    %v383 = vmul.f32 %v379, 0.03125
    %v384 = vadd.f32 %v380, 1e-05
    %v385 = vadd.f32 %v381, 1e-05
    %v386 = vadd.f32 %v382, 1e-05
    %v387 = vadd.f32 %v383, 1e-05
    %v388 = vrsqrt.pop %v384
    %v389 = vrsqrt.pop %v385
    %v390 = vrsqrt.pop %v386
    %v391 = vrsqrt.pop %v387
    %v392 = vmul.f32 %v364, %v388
    %v393 = vmul.f32 %v365, %v389
    %v394 = vmul.f32 %v366, %v390
    %v395 = vmul.f32 %v367, %v391
    %v397 = vlaneseq
    %v398 = vshrl.u32 %v397, 7
    %v399 = vsub.s32 0, %v398
    %v400 = vrot.slane %v35, %v399
    %v402 = vmul.f32 %v392, %v400
    %v403 = vmul.f32 %v393, %v400
    %v404 = vmul.f32 %v394, %v400
    %v405 = vmul.f32 %v395, %v400
    %v407 = vlaneseq
    %v408 = vshrl.u32 %v407, 7
    %v409 = vsub.s32 0, %v408
    %v410 = vrot.slane %v36, %v409
    %v412 = vadd.f32 %v402, %v410
    %v413 = vadd.f32 %v403, %v410
    %v414 = vadd.f32 %v404, %v410
    %v415 = vadd.f32 %v405, %v410
    %416 = vst [vmem:[#allocation2] sm:$0xff] %v412
    %417 = vst [vmem:[#allocation2 + $0x8] sm:$0xff] %v413
    %418 = vst [vmem:[#allocation2 + $0x10] sm:$0xff] %v414
    %419 = vst [vmem:[#allocation2 + $0x18] sm:$0xff] %v415
    // Predicated region
    $region26: #{tpu_custom_call.1} parent=1 // pred_check
      _
    $region27: #{tpu_custom_call.1} parent=1 // pred_check_branch
      %421 = sbr.rel (0) target = $region29
    $region28: #{tpu_custom_call.1} parent=1 // pred_region
      %s423 = ssub.s32 512, 512
      %424 = vsyncadd [#allocation3], %s423
      %s425 = sshll.u32 [#allocation2], 4
      %s426 = int_to_ptr.vmem [resolvable:$true] %s425
      %431 = dma.vmem_to_hbm [thread:$0]  %s426, 512, %s6, [#allocation3], 128, 128, 8
    $region29: #{tpu_custom_call.1} parent=1 // pred_fallthru
      _
    // Predicated region
    $region30: #{tpu_custom_call.1} parent=1 // pred_check
      _
    $region31: #{tpu_custom_call.1} parent=1 // pred_check_branch
      %433 = sbr.rel (0) target = $region33
    $region32: #{tpu_custom_call.1} parent=1 // pred_region
      %434 = dma.done [#allocation3], 512
    $region33: #{tpu_custom_call.1} parent=1 // pred_fallthru
      _
    %435 = vsyncpa [#allocation3], 1

</llo_original>
